<compile_context>
chip_gen: v5e
topology: v5e:2x2
jax: 0.10.0
libtpu: 0.0.40
codegen_flags: <defaults>
</compile_context>

<pallas_src>
import jax
import jax.numpy as jnp
from jax.experimental import pallas as pl
from jax.experimental.pallas import tpu as pltpu


def ff_kernel(x_ref, w1_ref, b1_ref, w2_ref, b2_ref, wo_ref, bo_ref,
              o_ref, h_ref):
    """Whole FF stack fused: two hidden linear+ReLU layers + output proj."""
    cdt = w1_ref.dtype  # matmul operand dtype (bf16 or f32)

    # hidden layer 1: relu(x @ W1 + b1), f32 accumulation on the MXU
    h = jnp.dot(x_ref[...], w1_ref[...], preferred_element_type=jnp.float32)
    h_ref[...] = jnp.maximum(h + b1_ref[...], 0.0)

    # hidden layer 2: relu(h @ W2 + b2)
    h = jnp.dot(h_ref[...].astype(cdt), w2_ref[...],
                preferred_element_type=jnp.float32)
    h_ref[...] = jnp.maximum(h + b2_ref[...], 0.0)

    # output projection (no activation)
    o = jnp.dot(h_ref[...].astype(cdt), wo_ref[...],
                preferred_element_type=jnp.float32)
    o_ref[...] = (o + bo_ref[...]).astype(o_ref.dtype)


def _round_up(n, m):
    return ((n + m - 1) // m) * m


def ff_forward(x, w1, b1, w2, b2, wo, bo, *, tile_n=128,
               compute_dtype=jnp.bfloat16):
    """x: [N, d_in] f32. Weights [d_in, d_out] (nn.Linear weight transposed),
    biases [1, d_out]. Returns [N, d_out] f32."""
    N, d_in = x.shape
    d_hid = w1.shape[1]
    d_out = wo.shape[1]

    LANE = 128
    d_in_p = _round_up(d_in, LANE)
    d_hid_p = _round_up(d_hid, LANE)
    d_out_p = _round_up(d_out, LANE)

    # Adaptive row tile: MXU-aligned (128) for large N, but don't pad tiny N
    # all the way to 128 rows (16 keeps bf16 sublane packing happy).
    tile_n = max(16, min(tile_n, _round_up(N, 16)))
    n_p = _round_up(N, tile_n)

    f32 = jnp.float32
    # Zero padding is exact: padded input cols hit zero weight rows, padded
    # hidden cols get zero bias (relu(0)=0), padded output cols are sliced off.
    xp = jnp.pad(x.astype(f32),
                 ((0, n_p - N), (0, d_in_p - d_in))).astype(compute_dtype)
    w1p = jnp.pad(w1, ((0, d_in_p - d_in), (0, d_hid_p - d_hid))).astype(compute_dtype)
    w2p = jnp.pad(w2, ((0, d_hid_p - d_hid), (0, d_hid_p - d_hid))).astype(compute_dtype)
    wop = jnp.pad(wo, ((0, d_hid_p - d_hid), (0, d_out_p - d_out))).astype(compute_dtype)
    b1p = jnp.pad(b1, ((0, 0), (0, d_hid_p - d_hid))).astype(f32)
    b2p = jnp.pad(b2, ((0, 0), (0, d_hid_p - d_hid))).astype(f32)
    bop = jnp.pad(bo, ((0, 0), (0, d_out_p - d_out))).astype(f32)

    grid = (n_p // tile_n,)
    # Weights/biases: constant index_map -> fetched once, resident across steps.
    resident = lambda shape: pl.BlockSpec(shape, lambda i: (0, 0))

    flops = 2 * n_p * (d_in_p * d_hid_p + d_hid_p * d_hid_p + d_hid_p * d_out_p)
    bytes_accessed = sum(int(a.size) * int(a.dtype.itemsize)
                         for a in (xp, w1p, b1p, w2p, b2p, wop, bop))
    bytes_accessed += int(n_p) * int(d_out_p) * 4  # f32 output

    # VMEM budget: weights/biases (resident, 2x for pipeline buffers) + x/out
    # tiles (2x double-buffered) + f32 scratch + slack.  Clamp to a range that
    # is safe on v5e/v6e (128 MiB) and v7x (64 MiB physical VMEM).
    itm = jnp.dtype(compute_dtype).itemsize
    weight_bytes = (w1p.size + w2p.size + wop.size) * itm + \
                   (b1p.size + b2p.size + bop.size) * 4
    tile_bytes = tile_n * (d_in_p * itm + d_out_p * 4) * 2 + tile_n * d_hid_p * 4
    vmem_limit = min(64 * 1024 * 1024,
                     max(32 * 1024 * 1024, 2 * weight_bytes + tile_bytes + (4 << 20)))

    out_p = pl.pallas_call(
        ff_kernel,
        out_shape=jax.ShapeDtypeStruct((n_p, d_out_p), jnp.float32),
        grid_spec=pltpu.PrefetchScalarGridSpec(
            num_scalar_prefetch=0,
            grid=grid,
            in_specs=[
                pl.BlockSpec((tile_n, d_in_p), lambda i: (i, 0)),  # x row tile
                resident((d_in_p, d_hid_p)),                        # W1
                resident((1, d_hid_p)),                             # b1
                resident((d_hid_p, d_hid_p)),                       # W2
                resident((1, d_hid_p)),                             # b2
                resident((d_hid_p, d_out_p)),                       # W_out
                resident((1, d_out_p)),                             # b_out
            ],
            out_specs=pl.BlockSpec((tile_n, d_out_p), lambda i: (i, 0)),
            scratch_shapes=[pltpu.VMEM((tile_n, d_hid_p), jnp.float32)],
        ),
        compiler_params=pltpu.CompilerParams(
            dimension_semantics=("parallel",),
            vmem_limit_bytes=int(vmem_limit),
        ),
        cost_estimate=pl.CostEstimate(flops=flops, transcendentals=0,
                                      bytes_accessed=bytes_accessed),
    )(xp, w1p, b1p, w2p, b2p, wop, bop)

    return out_p[:N, :d_out]


def ff_reference(x, w1, b1, w2, b2, wo, bo):
    h = jnp.maximum(x @ w1 + b1, 0.0)
    h = jnp.maximum(h @ w2 + b2, 0.0)
    return h @ wo + bo


if __name__ == "__main__":
    # Small shapes consistent with the module: batch=2, seq=8 -> N=16 tokens.
    batch, seq = 2, 8
    dim_input, dim_hidden, dim_output = 32, 32, 16
    N = batch * seq

    key = jax.random.PRNGKey(0)
    kx, k1, k2, k3, k4, k5, k6 = jax.random.split(key, 7)

    x = jax.random.normal(kx, (N, dim_input), dtype=jnp.float32)

    scale = 0.05
    # Stored as [in, out] (nn.Linear weight transposed) so kernel does x @ W.
    w1 = scale * jax.random.normal(k1, (dim_input, dim_hidden), dtype=jnp.float32)
    b1 = scale * jax.random.normal(k2, (1, dim_hidden), dtype=jnp.float32)
    w2 = scale * jax.random.normal(k3, (dim_hidden, dim_hidden), dtype=jnp.float32)
    b2 = scale * jax.random.normal(k4, (1, dim_hidden), dtype=jnp.float32)
    wo = scale * jax.random.normal(k5, (dim_hidden, dim_output), dtype=jnp.float32)
    bo = scale * jax.random.normal(k6, (1, dim_output), dtype=jnp.float32)

    ref = ff_reference(x, w1, b1, w2, b2, wo, bo)

    # f32 compute path: tight numerical check.
    out_f32 = jax.block_until_ready(
        ff_forward(x, w1, b1, w2, b2, wo, bo, compute_dtype=jnp.float32))
    assert out_f32.shape == (N, dim_output)
    assert jnp.allclose(out_f32, ref, atol=1e-4, rtol=1e-4)

    # bf16 matmul path (default; recommended on v6e/v7x): loose check.
    out_bf16 = jax.block_until_ready(ff_forward(x, w1, b1, w2, b2, wo, bo))
    assert out_bf16.shape == (N, dim_output)
    assert jnp.allclose(out_bf16, ref, atol=1e-2, rtol=5e-2)

    print("KERNEL_OK")
</pallas_src>

<mosaic_0001>
module attributes {stable_mosaic.version = 11 : i64} {
  func.func @ff_kernel(%arg0: i32, %arg1: memref<16x128xf32, #tpu.memory_space<vmem>>, %arg2: memref<128x128xf32, #tpu.memory_space<vmem>>, %arg3: memref<1x128xf32, #tpu.memory_space<vmem>>, %arg4: memref<128x128xf32, #tpu.memory_space<vmem>>, %arg5: memref<1x128xf32, #tpu.memory_space<vmem>>, %arg6: memref<128x128xf32, #tpu.memory_space<vmem>>, %arg7: memref<1x128xf32, #tpu.memory_space<vmem>>, %arg8: memref<16x128xf32, #tpu.memory_space<vmem>>, %arg9: memref<16x128xf32, #tpu.memory_space<vmem>>) attributes {dimension_semantics = [#tpu.dimension_semantics<parallel>], iteration_bounds = array<i64: 1>, scalar_prefetch = 0 : i64, scratch_operands = 1 : i64, tpu.core_type = #tpu.core_type<tc>, window_params = [{transform_indices = @transform_0, window_bounds = array<i64: 16, 128>}, {pipeline_mode = #tpu.pipeline_mode<synchronous>, transform_indices = @transform_1, window_bounds = array<i64: 128, 128>}, {pipeline_mode = #tpu.pipeline_mode<synchronous>, transform_indices = @transform_2, window_bounds = array<i64: 1, 128>}, {pipeline_mode = #tpu.pipeline_mode<synchronous>, transform_indices = @transform_3, window_bounds = array<i64: 128, 128>}, {pipeline_mode = #tpu.pipeline_mode<synchronous>, transform_indices = @transform_4, window_bounds = array<i64: 1, 128>}, {pipeline_mode = #tpu.pipeline_mode<synchronous>, transform_indices = @transform_5, window_bounds = array<i64: 128, 128>}, {pipeline_mode = #tpu.pipeline_mode<synchronous>, transform_indices = @transform_6, window_bounds = array<i64: 1, 128>}, {transform_indices = @transform_7, window_bounds = array<i64: 16, 128>}]} {
    %c0 = arith.constant 0 : index
    %c0_0 = arith.constant 0 : index
    %0 = vector.load %arg1[%c0, %c0_0] : memref<16x128xf32, #tpu.memory_space<vmem>>, vector<16x128xf32>
    %c0_1 = arith.constant 0 : index
    %c0_2 = arith.constant 0 : index
    %1 = vector.load %arg2[%c0_1, %c0_2] : memref<128x128xf32, #tpu.memory_space<vmem>>, vector<128x128xf32>
    %cst = arith.constant dense<0.000000e+00> : vector<16x128xf32>
    %2 = tpu.matmul %0, %1, %cst {dimension_numbers = #tpu.dot_dimension_numbers<[1], [0], [0], [1], [0, 0, 1, 1], [], []>} : vector<16x128xf32>, vector<128x128xf32>, vector<16x128xf32> -> vector<16x128xf32>
    %c0_3 = arith.constant 0 : index
    %c0_4 = arith.constant 0 : index
    %3 = vector.load %arg3[%c0_3, %c0_4] : memref<1x128xf32, #tpu.memory_space<vmem>>, vector<1x128xf32>
    %4 = vector.broadcast %3 : vector<1x128xf32> to vector<16x128xf32>
    %5 = arith.addf %2, %4 : vector<16x128xf32>
    %cst_5 = arith.constant 0.000000e+00 : f32
    %6 = vector.broadcast %cst_5 : f32 to vector<16x128xf32>
    %7 = arith.maximumf %5, %6 : vector<16x128xf32>
    %c0_6 = arith.constant 0 : index
    %c0_7 = arith.constant 0 : index
    %8 = vector.load %arg9[%c0_6, %c0_7] : memref<16x128xf32, #tpu.memory_space<vmem>>, vector<16x128xf32>
    tpu.vector_store %arg9[%c0_6, %c0_7], %7 {strides = array<i32>} : memref<16x128xf32, #tpu.memory_space<vmem>>, vector<16x128xf32>,
    %c0_8 = arith.constant 0 : index
    %c0_9 = arith.constant 0 : index
    %9 = vector.load %arg9[%c0_8, %c0_9] : memref<16x128xf32, #tpu.memory_space<vmem>>, vector<16x128xf32>
    %c0_10 = arith.constant 0 : index
    %c0_11 = arith.constant 0 : index
    %10 = vector.load %arg4[%c0_10, %c0_11] : memref<128x128xf32, #tpu.memory_space<vmem>>, vector<128x128xf32>
    %cst_12 = arith.constant dense<0.000000e+00> : vector<16x128xf32>
    %11 = tpu.matmul %9, %10, %cst_12 {dimension_numbers = #tpu.dot_dimension_numbers<[1], [0], [0], [1], [0, 0, 1, 1], [], []>} : vector<16x128xf32>, vector<128x128xf32>, vector<16x128xf32> -> vector<16x128xf32>
    %c0_13 = arith.constant 0 : index
    %c0_14 = arith.constant 0 : index
    %12 = vector.load %arg5[%c0_13, %c0_14] : memref<1x128xf32, #tpu.memory_space<vmem>>, vector<1x128xf32>
    %13 = vector.broadcast %12 : vector<1x128xf32> to vector<16x128xf32>
    %14 = arith.addf %11, %13 : vector<16x128xf32>
    %cst_15 = arith.constant 0.000000e+00 : f32
    %15 = vector.broadcast %cst_15 : f32 to vector<16x128xf32>
    %16 = arith.maximumf %14, %15 : vector<16x128xf32>
    %c0_16 = arith.constant 0 : index
    %c0_17 = arith.constant 0 : index
    %17 = vector.load %arg9[%c0_16, %c0_17] : memref<16x128xf32, #tpu.memory_space<vmem>>, vector<16x128xf32>
    tpu.vector_store %arg9[%c0_16, %c0_17], %16 {strides = array<i32>} : memref<16x128xf32, #tpu.memory_space<vmem>>, vector<16x128xf32>,
    %c0_18 = arith.constant 0 : index
    %c0_19 = arith.constant 0 : index
    %18 = vector.load %arg9[%c0_18, %c0_19] : memref<16x128xf32, #tpu.memory_space<vmem>>, vector<16x128xf32>
    %c0_20 = arith.constant 0 : index
    %c0_21 = arith.constant 0 : index
    %19 = vector.load %arg6[%c0_20, %c0_21] : memref<128x128xf32, #tpu.memory_space<vmem>>, vector<128x128xf32>
    %cst_22 = arith.constant dense<0.000000e+00> : vector<16x128xf32>
    %20 = tpu.matmul %18, %19, %cst_22 {dimension_numbers = #tpu.dot_dimension_numbers<[1], [0], [0], [1], [0, 0, 1, 1], [], []>} : vector<16x128xf32>, vector<128x128xf32>, vector<16x128xf32> -> vector<16x128xf32>
    %c0_23 = arith.constant 0 : index
    %c0_24 = arith.constant 0 : index
    %21 = vector.load %arg7[%c0_23, %c0_24] : memref<1x128xf32, #tpu.memory_space<vmem>>, vector<1x128xf32>
    %22 = vector.broadcast %21 : vector<1x128xf32> to vector<16x128xf32>
    %23 = arith.addf %20, %22 : vector<16x128xf32>
    %c0_25 = arith.constant 0 : index
    %c0_26 = arith.constant 0 : index
    %24 = vector.load %arg8[%c0_25, %c0_26] : memref<16x128xf32, #tpu.memory_space<vmem>>, vector<16x128xf32>
    tpu.vector_store %arg8[%c0_25, %c0_26], %23 {strides = array<i32>} : memref<16x128xf32, #tpu.memory_space<vmem>>, vector<16x128xf32>,
    return
  }
  func.func @transform_0(%arg0: i32) -> (i32, i32) {
    %c0_i32 = arith.constant 0 : i32
    %c0_i32_0 = arith.constant 0 : i32
    return %arg0, %c0_i32 : i32, i32
  }
  func.func @transform_1(%arg0: i32) -> (i32, i32) {
    %c0_i32 = arith.constant 0 : i32
    %c0_i32_0 = arith.constant 0 : i32
    %c0_i32_1 = arith.constant 0 : i32
    return %c0_i32, %c0_i32_0 : i32, i32
  }
  func.func @transform_2(%arg0: i32) -> (i32, i32) {
    %c0_i32 = arith.constant 0 : i32
    %c0_i32_0 = arith.constant 0 : i32
    %c0_i32_1 = arith.constant 0 : i32
    return %c0_i32, %c0_i32_0 : i32, i32
  }
  func.func @transform_3(%arg0: i32) -> (i32, i32) {
    %c0_i32 = arith.constant 0 : i32
    %c0_i32_0 = arith.constant 0 : i32
    %c0_i32_1 = arith.constant 0 : i32
    return %c0_i32, %c0_i32_0 : i32, i32
  }
  func.func @transform_4(%arg0: i32) -> (i32, i32) {
    %c0_i32 = arith.constant 0 : i32
    %c0_i32_0 = arith.constant 0 : i32
    %c0_i32_1 = arith.constant 0 : i32
    return %c0_i32, %c0_i32_0 : i32, i32
  }
  func.func @transform_5(%arg0: i32) -> (i32, i32) {
    %c0_i32 = arith.constant 0 : i32
    %c0_i32_0 = arith.constant 0 : i32
    %c0_i32_1 = arith.constant 0 : i32
    return %c0_i32, %c0_i32_0 : i32, i32
  }
  func.func @transform_6(%arg0: i32) -> (i32, i32) {
    %c0_i32 = arith.constant 0 : i32
    %c0_i32_0 = arith.constant 0 : i32
    %c0_i32_1 = arith.constant 0 : i32
    return %c0_i32, %c0_i32_0 : i32, i32
  }
  func.func @transform_7(%arg0: i32) -> (i32, i32) {
    %c0_i32 = arith.constant 0 : i32
    %c0_i32_0 = arith.constant 0 : i32
    return %arg0, %c0_i32 : i32, i32
  }
}

</mosaic_0001>

<llo_original>
// kernel: tpu_custom_call.1
$region0: #{tpu_custom_call.1}
  #allocation0 [shape = 'u32[]', space=smem, size = 0x4, offset = 0x4, fixed_abs, tag = 'smem constant byte address 0x4 - core index']
  #allocation1 [shape = 'u32[72,128]{1,0:T(1,128)}', space=vmem, size = 0x9000, scoped, tag = 'internal scratch']
  #allocation2 [shape = 'f32[16,128]{1,0:T(8,128)}', space=vmem, size = 0x2000, scoped, tag = 'scratch operand']
  %s0 = inlined_call_operand.hbm [shape: f32[16,128], index: 0, kind: input, shape index: {}]
  %s1 = inlined_call_operand.hbm [shape: f32[128,128], index: 1, kind: input, shape index: {}]
  %s2 = inlined_call_operand.vmem [shape: f32[1,128], index: 2, kind: input, shape index: {}]
  %s3 = inlined_call_operand.hbm [shape: f32[128,128], index: 3, kind: input, shape index: {}]
  %s4 = inlined_call_operand.vmem [shape: f32[1,128], index: 4, kind: input, shape index: {}]
  %s5 = inlined_call_operand.hbm [shape: f32[128,128], index: 5, kind: input, shape index: {}]
  %s6 = inlined_call_operand.vmem [shape: f32[1,128], index: 6, kind: input, shape index: {}]
  %s7 = inlined_call_operand.hbm [shape: f32[16,128], index: 7, kind: output, shape index: {}]
  %s8 = sld [smem:[#allocation0]]
  $region54: #{tpu_custom_call.1} parent=0
    _
  %s10 = ssub.s32 1, %s8
  %s11 = scalar_select 0, %s10, %s8
  $region1: #{tpu_custom_call.1} parent=0
    #allocation3 [shape = 'u8[8192]{0}', space=vmem, size = 0x2000, scoped, tag = 'input window, operand 0, single buffered']
    #allocation4 [shape = 's32[1]{0}', space=sflag, size = 0x4, scoped, tag = 'scoped memory for tpu_custom_call.1']
    #allocation5 [shape = 's32[1]{0}', space=sflag, size = 0x4, scoped, tag = 'scoped memory for tpu_custom_call.1']
    #allocation6 [shape = 'u8[65536]{0}', space=vmem, size = 0x10000, scoped, tag = 'input window, operand 1, single buffered']
    #allocation7 [shape = 's32[1]{0}', space=sflag, size = 0x4, scoped, tag = 'scoped memory for tpu_custom_call.1']
    #allocation8 [shape = 'u8[65536]{0}', space=vmem, size = 0x10000, scoped, tag = 'input window, operand 3, single buffered']
    #allocation9 [shape = 'u8[65536]{0}', space=vmem, size = 0x10000, scoped, tag = 'input window, operand 5, single buffered']
    #allocation10 [shape = 's32[1]{0}', space=sflag, size = 0x4, scoped, tag = 'scoped memory for tpu_custom_call.1']
    #allocation11 [shape = 'u8[8192]{0}', space=vmem, size = 0x2000, scoped, tag = 'output window, operand 0, single buffered']
    %12 = vsyncpa [#allocation4], 0
    %13 = vsyncpa [#allocation7], 0
    %14 = vsyncpa [#allocation10], 0
    %15 = vsyncpa [#allocation5], 0
    // Predicated region
    $region2: #{tpu_custom_call.1} parent=1 // pred_check
      _
    $region3: #{tpu_custom_call.1} parent=1 // pred_check_branch
      %17 = sbr.rel (0) target = $region5
    $region4: #{tpu_custom_call.1} parent=1 // pred_region
      %19 = vsyncadd [#allocation4], 0
      %s20 = sshll.u32 %s0, 4
      %s21 = int_to_ptr.hbm [resolvable:$true] %s20
      %s22 = sshll.u32 [#allocation3], 4
      %s23 = int_to_ptr.vmem [resolvable:$true] %s22
      %28 = dma.hbm_to_vmem [thread:$0]  %s21, 256, %s23, [#allocation4], 128, 128, 8
    $region5: #{tpu_custom_call.1} parent=1 // pred_fallthru
      _
    // Predicated region
    $region6: #{tpu_custom_call.1} parent=1 // pred_check
      _
    $region7: #{tpu_custom_call.1} parent=1 // pred_check_branch
      %30 = sbr.rel (0) target = $region9
    $region8: #{tpu_custom_call.1} parent=1 // pred_region
      %32 = vsyncadd [#allocation7], 0
      %s33 = sshll.u32 %s1, 4
      %s34 = int_to_ptr.hbm [resolvable:$true] %s33
      %s35 = sshll.u32 [#allocation6], 4
      %s36 = int_to_ptr.vmem [resolvable:$true] %s35
      %41 = dma.hbm_to_vmem [thread:$0]  %s34, 2048, %s36, [#allocation7], 128, 128, 8
    $region9: #{tpu_custom_call.1} parent=1 // pred_fallthru
      _
    // Predicated region
    $region10: #{tpu_custom_call.1} parent=1 // pred_check
      _
    $region11: #{tpu_custom_call.1} parent=1 // pred_check_branch
      %43 = sbr.rel (0) target = $region13
    $region12: #{tpu_custom_call.1} parent=1 // pred_region
      _
    $region13: #{tpu_custom_call.1} parent=1 // pred_fallthru
      _
    // Predicated region
    $region14: #{tpu_custom_call.1} parent=1 // pred_check
      _
    $region15: #{tpu_custom_call.1} parent=1 // pred_check_branch
      %45 = sbr.rel (0) target = $region17
    $region16: #{tpu_custom_call.1} parent=1 // pred_region
      %47 = vsyncadd [#allocation7], 0
      %s48 = sshll.u32 %s3, 4
      %s49 = int_to_ptr.hbm [resolvable:$true] %s48
      %s50 = sshll.u32 [#allocation8], 4
      %s51 = int_to_ptr.vmem [resolvable:$true] %s50
      %56 = dma.hbm_to_vmem [thread:$0]  %s49, 2048, %s51, [#allocation7], 128, 128, 8
    $region17: #{tpu_custom_call.1} parent=1 // pred_fallthru
      _
    // Predicated region
    $region18: #{tpu_custom_call.1} parent=1 // pred_check
      _
    $region19: #{tpu_custom_call.1} parent=1 // pred_check_branch
      %58 = sbr.rel (0) target = $region21
    $region20: #{tpu_custom_call.1} parent=1 // pred_region
      _
    $region21: #{tpu_custom_call.1} parent=1 // pred_fallthru
      _
    // Predicated region
    $region22: #{tpu_custom_call.1} parent=1 // pred_check
      _
    $region23: #{tpu_custom_call.1} parent=1 // pred_check_branch
      %60 = sbr.rel (0) target = $region25
    $region24: #{tpu_custom_call.1} parent=1 // pred_region
      %62 = vsyncadd [#allocation10], 0
      %s63 = sshll.u32 %s5, 4
      %s64 = int_to_ptr.hbm [resolvable:$true] %s63
      %s65 = sshll.u32 [#allocation9], 4
      %s66 = int_to_ptr.vmem [resolvable:$true] %s65
      %71 = dma.hbm_to_vmem [thread:$0]  %s64, 2048, %s66, [#allocation10], 128, 128, 8
    $region25: #{tpu_custom_call.1} parent=1 // pred_fallthru
      _
    // Predicated region
    $region26: #{tpu_custom_call.1} parent=1 // pred_check
      _
    $region27: #{tpu_custom_call.1} parent=1 // pred_check_branch
      %73 = sbr.rel (0) target = $region29
    $region28: #{tpu_custom_call.1} parent=1 // pred_region
      _
    $region29: #{tpu_custom_call.1} parent=1 // pred_fallthru
      _
    // Predicated region
    $region30: #{tpu_custom_call.1} parent=1 // pred_check
      _
    $region31: #{tpu_custom_call.1} parent=1 // pred_check_branch
      %75 = sbr.rel (0) target = $region33
    $region32: #{tpu_custom_call.1} parent=1 // pred_region
      %77 = dma.done [#allocation4], 256
    $region33: #{tpu_custom_call.1} parent=1 // pred_fallthru
      _
    // Predicated region
    $region34: #{tpu_custom_call.1} parent=1 // pred_check
      _
    $region35: #{tpu_custom_call.1} parent=1 // pred_check_branch
      %79 = sbr.rel (0) target = $region37
    $region36: #{tpu_custom_call.1} parent=1 // pred_region
      %81 = dma.done [#allocation7], 2048
    $region37: #{tpu_custom_call.1} parent=1 // pred_fallthru
      _
    // Predicated region
    $region38: #{tpu_custom_call.1} parent=1 // pred_check
      _
    $region39: #{tpu_custom_call.1} parent=1 // pred_check_branch
      %83 = sbr.rel (0) target = $region41
    $region40: #{tpu_custom_call.1} parent=1 // pred_region
      %85 = dma.done [#allocation7], 2048
    $region41: #{tpu_custom_call.1} parent=1 // pred_fallthru
      _
    // Predicated region
    $region42: #{tpu_custom_call.1} parent=1 // pred_check
      _
    $region43: #{tpu_custom_call.1} parent=1 // pred_check_branch
      %87 = sbr.rel (0) target = $region45
    $region44: #{tpu_custom_call.1} parent=1 // pred_region
      %89 = dma.done [#allocation10], 2048
    $region45: #{tpu_custom_call.1} parent=1 // pred_fallthru
      _
    %v90 = vld [vmem:[#allocation3] sm:$0xff]
    %v91 = vld [vmem:[#allocation3 + $0x8] sm:$0xff]
    %v92 = vld [vmem:[#allocation6] sm:$0xff]
    %v93 = vld [vmem:[#allocation6 + $0x8] sm:$0xff]
    %v94 = vld [vmem:[#allocation6 + $0x10] sm:$0xff]
    %v95 = vld [vmem:[#allocation6 + $0x18] sm:$0xff]
    %v96 = vld [vmem:[#allocation6 + $0x20] sm:$0xff]
    %v97 = vld [vmem:[#allocation6 + $0x28] sm:$0xff]
    %v98 = vld [vmem:[#allocation6 + $0x30] sm:$0xff]
    %v99 = vld [vmem:[#allocation6 + $0x38] sm:$0xff]
    %v100 = vld [vmem:[#allocation6 + $0x40] sm:$0xff]
    %v101 = vld [vmem:[#allocation6 + $0x48] sm:$0xff]
    %v102 = vld [vmem:[#allocation6 + $0x50] sm:$0xff]
    %v103 = vld [vmem:[#allocation6 + $0x58] sm:$0xff]
    %v104 = vld [vmem:[#allocation6 + $0x60] sm:$0xff]
    %v105 = vld [vmem:[#allocation6 + $0x68] sm:$0xff]
    %v106 = vld [vmem:[#allocation6 + $0x70] sm:$0xff]
    %v107 = vld [vmem:[#allocation6 + $0x78] sm:$0xff]
    %v108 = vld [vmem:[%s2] sm:$0x1]
    %v110 = vperm.slane %v108, 0
    %112 = vmatpush.msra.mxu0 %v107
    %113 = vmatpush.msra.mxu0 %v106
    %114 = vmatpush.msra.mxu0 %v105
    %115 = vmatpush.msra.mxu0 %v104
    %116 = vmatpush.msra.mxu0 %v103
    %117 = vmatpush.msra.mxu0 %v102
    %118 = vmatpush.msra.mxu0 %v101
    %119 = vmatpush.msra.mxu0 %v100
    %120 = vmatpush.msra.mxu0 %v99
    %121 = vmatpush.msra.mxu0 %v98
    %122 = vmatpush.msra.mxu0 %v97
    %123 = vmatpush.msra.mxu0 %v96
    %124 = vmatpush.msra.mxu0 %v95
    %125 = vmatpush.msra.mxu0 %v94
    %126 = vmatpush.msra.mxu0 %v93
    %127 = vmatpush.msra.mxu0 %v92
    %128 = vmatmul.f32.gmra.mxu0 %v90
    %v129 = vpop.f32.mrf.mxu0
    %v130 = vadd.f32 %v110, %v129
    %131 = vmatmul.f32.gmra.mxu0 %v91
    %v132 = vpop.f32.mrf.mxu0
    %v133 = vadd.f32 %v110, %v132
    %134 = vdwg.mxu0
    %v135 = vmax.f32 %v130, 0.0
    %v136 = vmax.f32 %v133, 0.0
    %137 = vst [vmem:[#allocation2] sm:$0xff] %v135
    %138 = vst [vmem:[#allocation2 + $0x8] sm:$0xff] %v136
    %v139 = vld [vmem:[#allocation2] sm:$0xff]
    %v140 = vld [vmem:[#allocation2 + $0x8] sm:$0xff]
    %v141 = vld [vmem:[#allocation8] sm:$0xff]
    %v142 = vld [vmem:[#allocation8 + $0x8] sm:$0xff]
    %v143 = vld [vmem:[#allocation8 + $0x10] sm:$0xff]
    %v144 = vld [vmem:[#allocation8 + $0x18] sm:$0xff]
    %v145 = vld [vmem:[#allocation8 + $0x20] sm:$0xff]
    %v146 = vld [vmem:[#allocation8 + $0x28] sm:$0xff]
    %v147 = vld [vmem:[#allocation8 + $0x30] sm:$0xff]
    %v148 = vld [vmem:[#allocation8 + $0x38] sm:$0xff]
    %v149 = vld [vmem:[#allocation8 + $0x40] sm:$0xff]
    %v150 = vld [vmem:[#allocation8 + $0x48] sm:$0xff]
    %v151 = vld [vmem:[#allocation8 + $0x50] sm:$0xff]
    %v152 = vld [vmem:[#allocation8 + $0x58] sm:$0xff]
    %v153 = vld [vmem:[#allocation8 + $0x60] sm:$0xff]
    %v154 = vld [vmem:[#allocation8 + $0x68] sm:$0xff]
    %v155 = vld [vmem:[#allocation8 + $0x70] sm:$0xff]
    %v156 = vld [vmem:[#allocation8 + $0x78] sm:$0xff]
    %v157 = vld [vmem:[%s4] sm:$0x1]
    %v159 = vperm.slane %v157, 0
    %161 = vmatpush.msra.mxu0 %v156
    %162 = vmatpush.msra.mxu0 %v155
    %163 = vmatpush.msra.mxu0 %v154
    %164 = vmatpush.msra.mxu0 %v153
    %165 = vmatpush.msra.mxu0 %v152
    %166 = vmatpush.msra.mxu0 %v151
    %167 = vmatpush.msra.mxu0 %v150
    %168 = vmatpush.msra.mxu0 %v149
    %169 = vmatpush.msra.mxu0 %v148
    %170 = vmatpush.msra.mxu0 %v147
    %171 = vmatpush.msra.mxu0 %v146
    %172 = vmatpush.msra.mxu0 %v145
    %173 = vmatpush.msra.mxu0 %v144
    %174 = vmatpush.msra.mxu0 %v143
    %175 = vmatpush.msra.mxu0 %v142
    %176 = vmatpush.msra.mxu0 %v141
    %177 = vmatmul.f32.gmra.mxu0 %v139
    %v178 = vpop.f32.mrf.mxu0
    %v179 = vadd.f32 %v159, %v178
    %180 = vmatmul.f32.gmra.mxu0 %v140
    %v181 = vpop.f32.mrf.mxu0
    %v182 = vadd.f32 %v159, %v181
    %183 = vdwg.mxu0
    %v184 = vmax.f32 %v179, 0.0
    %v185 = vmax.f32 %v182, 0.0
    %186 = vst [vmem:[#allocation2] sm:$0xff] %v184
    %187 = vst [vmem:[#allocation2 + $0x8] sm:$0xff] %v185
    %v188 = vld [vmem:[#allocation2] sm:$0xff]
    %v189 = vld [vmem:[#allocation2 + $0x8] sm:$0xff]
    %v190 = vld [vmem:[#allocation9] sm:$0xff]
    %v191 = vld [vmem:[#allocation9 + $0x8] sm:$0xff]
    %v192 = vld [vmem:[#allocation9 + $0x10] sm:$0xff]
    %v193 = vld [vmem:[#allocation9 + $0x18] sm:$0xff]
    %v194 = vld [vmem:[#allocation9 + $0x20] sm:$0xff]
    %v195 = vld [vmem:[#allocation9 + $0x28] sm:$0xff]
    %v196 = vld [vmem:[#allocation9 + $0x30] sm:$0xff]
    %v197 = vld [vmem:[#allocation9 + $0x38] sm:$0xff]
    %v198 = vld [vmem:[#allocation9 + $0x40] sm:$0xff]
    %v199 = vld [vmem:[#allocation9 + $0x48] sm:$0xff]
    %v200 = vld [vmem:[#allocation9 + $0x50] sm:$0xff]
    %v201 = vld [vmem:[#allocation9 + $0x58] sm:$0xff]
    %v202 = vld [vmem:[#allocation9 + $0x60] sm:$0xff]
    %v203 = vld [vmem:[#allocation9 + $0x68] sm:$0xff]
    %v204 = vld [vmem:[#allocation9 + $0x70] sm:$0xff]
    %v205 = vld [vmem:[#allocation9 + $0x78] sm:$0xff]
    %v206 = vld [vmem:[%s6] sm:$0x1]
    %v208 = vperm.slane %v206, 0
    %210 = vmatpush.msra.mxu0 %v205
    %211 = vmatpush.msra.mxu0 %v204
    %212 = vmatpush.msra.mxu0 %v203
    %213 = vmatpush.msra.mxu0 %v202
    %214 = vmatpush.msra.mxu0 %v201
    %215 = vmatpush.msra.mxu0 %v200
    %216 = vmatpush.msra.mxu0 %v199
    %217 = vmatpush.msra.mxu0 %v198
    %218 = vmatpush.msra.mxu0 %v197
    %219 = vmatpush.msra.mxu0 %v196
    %220 = vmatpush.msra.mxu0 %v195
    %221 = vmatpush.msra.mxu0 %v194
    %222 = vmatpush.msra.mxu0 %v193
    %223 = vmatpush.msra.mxu0 %v192
    %224 = vmatpush.msra.mxu0 %v191
    %225 = vmatpush.msra.mxu0 %v190
    %226 = vmatmul.f32.gmra.mxu0 %v188
    %v227 = vpop.f32.mrf.mxu0
    %v228 = vadd.f32 %v208, %v227
    %229 = vmatmul.f32.gmra.mxu0 %v189
    %v230 = vpop.f32.mrf.mxu0
    %v231 = vadd.f32 %v208, %v230
    %232 = vdwg.mxu0
    %233 = vst [vmem:[#allocation11] sm:$0xff] %v228
    %234 = vst [vmem:[#allocation11 + $0x8] sm:$0xff] %v231
    // Predicated region
    $region46: #{tpu_custom_call.1} parent=1 // pred_check
      _
    $region47: #{tpu_custom_call.1} parent=1 // pred_check_branch
      %236 = sbr.rel (0) target = $region49
    $region48: #{tpu_custom_call.1} parent=1 // pred_region
      %238 = vsyncadd [#allocation5], 0
      %s239 = sshll.u32 [#allocation11], 4
      %s240 = int_to_ptr.vmem [resolvable:$true] %s239
      %s241 = sshll.u32 %s7, 4
      %s242 = int_to_ptr.hbm [resolvable:$true] %s241
      %247 = dma.vmem_to_hbm [thread:$0]  %s240, 256, %s242, [#allocation5], 128, 128, 8
    $region49: #{tpu_custom_call.1} parent=1 // pred_fallthru
      _
    // Predicated region
    $region50: #{tpu_custom_call.1} parent=1 // pred_check
      _
    $region51: #{tpu_custom_call.1} parent=1 // pred_check_branch
      %249 = sbr.rel (0) target = $region53
    $region52: #{tpu_custom_call.1} parent=1 // pred_region
      %251 = dma.done [#allocation5], 256
    $region53: #{tpu_custom_call.1} parent=1 // pred_fallthru
      _
    %252 = vsyncpa [#allocation4], 1
    %253 = vsyncpa [#allocation7], 1
    %254 = vsyncpa [#allocation10], 1
    %255 = vsyncpa [#allocation5], 1

</llo_original>
